<compile_context>
chip_gen: v7x
topology: tpu7x:2x2x1
jax: 0.10.0
libtpu: 0.0.40
codegen_flags: <defaults>
</compile_context>

<pallas_src>
import functools

import numpy as np
import jax
import jax.numpy as jnp
from jax import lax
from jax.experimental import pallas as pl
from jax.experimental.pallas import tpu as pltpu

POOL_K = 5  # AvgPool2d kernel
POOL_S = 3  # AvgPool2d stride

_VMEM = pl.BlockSpec(memory_space=pltpu.MemorySpace.VMEM)


def _make_pool_matrix(h, w, out_h, out_w):
    """A[p, hw] = 1/25 iff pixel hw = y*w + x lies in the 5x5 window of output p."""
    a = np.zeros((out_h * out_w, h * w), np.float32)
    inv = 1.0 / (POOL_K * POOL_K)
    for oh in range(out_h):
        for ow in range(out_w):
            p = oh * out_w + ow
            for kh in range(POOL_K):
                for kw in range(POOL_K):
                    a[p, (oh * POOL_S + kh) * w + (ow * POOL_S + kw)] = inv
    return a


# ----------------------------------------------------------------------------
# Kernel 1: AvgPool2d(5,3) + Conv2d(1x1) (+ folded BatchNorm eval) + ReLU
#   grid = (N,): one sample per step; pool matrix / conv weight / shift have a
#   constant block index so they stay resident in VMEM across steps.
# ----------------------------------------------------------------------------
def _pool_conv_bn_relu_kernel(a_ref, x_ref, w_ref, shift_ref, o_ref, *, conv_first):
    # a_ref    : (P, HW)          bf16 averaging matrix (1/25 over each 5x5 window)
    # x_ref    : (C, HW)          f32  one sample in its native NCHW layout
    # w_ref    : conv_first -> (128, C) bf16 ; else -> (C, 128) bf16
    #            (1x1 conv weight pre-scaled by the BN scale)
    # shift_ref: (1, 128)         f32  folded conv-bias + BN shift
    # o_ref    : (P, 128)         bf16 lane-dense per-sample features
    x = x_ref[...].astype(jnp.bfloat16)
    if conv_first:
        # conv then pool: no large operand / intermediate has a lane dim < 128,
        # even for small C_in (the 32-channel test config).
        z = jnp.dot(w_ref[...], x, preferred_element_type=jnp.float32)       # (128, HW)
        y = lax.dot_general(a_ref[...], z.astype(jnp.bfloat16),
                            (((1,), (1,)), ((), ())),
                            preferred_element_type=jnp.float32)              # (P, 128)
    else:
        # pool then conv: fewer MXU flops at real InceptionAux channel counts.
        pooled = lax.dot_general(a_ref[...], x, (((1,), (1,)), ((), ())),
                                 preferred_element_type=jnp.float32)         # (P, C)
        y = jnp.dot(pooled.astype(jnp.bfloat16), w_ref[...],
                    preferred_element_type=jnp.float32)                      # (P, 128)
    o_ref[...] = jnp.maximum(y + shift_ref[...], 0.0).astype(o_ref.dtype)


def pool_conv_bn_relu(x, pool_mat_bf, conv_w_scaled_bf, shift):
    """x: (N, C, H, W) f32.  conv_w_scaled_bf: (128, C) bf16.  Returns (N, 2048) bf16."""
    n, c, h, w = x.shape
    p, hw = pool_mat_bf.shape
    c_out = conv_w_scaled_bf.shape[0]
    conv_first = c < 128
    # One-time tiny layout choice of the (already BN-scaled) conv weight.
    w_arg = conv_w_scaled_bf if conv_first else conv_w_scaled_bf.T           # (C, 128)
    x3 = x.reshape(n, c, h * w)                                              # free reshape

    feat = pl.pallas_call(
        functools.partial(_pool_conv_bn_relu_kernel, conv_first=conv_first),
        out_shape=jax.ShapeDtypeStruct((n, p, c_out), jnp.bfloat16),
        grid=(n,),
        in_specs=[
            pl.BlockSpec((p, hw), lambda i: (0, 0)),              # resident
            pl.BlockSpec((None, c, h * w), lambda i: (i, 0, 0)),  # per-sample slab
            pl.BlockSpec(w_arg.shape, lambda i: (0, 0)),          # resident
            pl.BlockSpec((1, c_out), lambda i: (0, 0)),           # resident
        ],
        out_specs=pl.BlockSpec((None, p, c_out), lambda i: (i, 0, 0)),
        compiler_params=pltpu.CompilerParams(dimension_semantics=("parallel",)),
    )(pool_mat_bf, x3, w_arg, shift)

    # (N, P, 128) -> (N, P*128): contiguous, zero-cost.  PyTorch's C-major flatten
    # order is folded into the host-side w1 row permutation.
    return feat.reshape(n, p * c_out)


# ----------------------------------------------------------------------------
# Kernel 2: Linear(2048,1024) + ReLU + Dropout(eval: identity) + Linear(1024,NC)
# ----------------------------------------------------------------------------
def _classifier_kernel(feat_ref, w1_ref, b1_ref, w2_ref, b2_ref, o_ref):
    # feat arrives as bf16 straight from kernel 1 (no in-kernel re-cast).
    h = jnp.dot(feat_ref[...], w1_ref[...],
                preferred_element_type=jnp.float32) + b1_ref[...]
    h = jnp.maximum(h, 0.0)
    # TODO(synk): Dropout(p=0.7) is identity in eval mode; training-mode random
    # masking is not reproduced here.
    o_ref[...] = (jnp.dot(h.astype(jnp.bfloat16), w2_ref[...],
                          preferred_element_type=jnp.float32) + b2_ref[...])


def classifier(feat_bf, w1_bf, b1, w2_bf, b2, num_classes):
    n = feat_bf.shape[0]
    nc_pad = w2_bf.shape[1]
    # Single step: all operands (~4.3 MiB bf16) fit comfortably in scoped VMEM.
    # TODO(synk): for large batch, tile HIDDEN with a grid + VMEM accumulator and
    # stream int8 (v5e/v6e) / fp8 (v7x) weights instead of bf16.
    logits = pl.pallas_call(
        _classifier_kernel,
        out_shape=jax.ShapeDtypeStruct((n, nc_pad), jnp.float32),
        in_specs=[_VMEM] * 5,
        out_specs=_VMEM,
    )(feat_bf, w1_bf, b1, w2_bf, b2)
    return logits[:, :num_classes]


def inception_aux_forward(x, params, num_classes):
    feat = pool_conv_bn_relu(x, params["pool_mat"], params["conv_w_scaled"],
                             params["shift"])
    return classifier(feat, params["w1_bf"], params["b1"],
                      params["w2_bf"], params["b2"], num_classes)


# ----------------------------------------------------------------------------
# Pure-JAX reference (module semantics; classifier uses the same bf16-quantized
# weights/activations the kernel streams).
# ----------------------------------------------------------------------------
def _reference_forward(x, conv_w, conv_b, bn, w1, b1, w2, b2, eps):
    gamma, beta, mean, var = bn
    scale = gamma / jnp.sqrt(var + eps)
    shift = beta + (conv_b - mean) * scale
    pooled = lax.reduce_window(x, 0.0, lax.add, (1, 1, POOL_K, POOL_K),
                               (1, 1, POOL_S, POOL_S), "VALID") / (POOL_K * POOL_K)
    y = jnp.einsum("nchw,kc->nkhw", pooled, conv_w)
    y = jnp.maximum(y * scale[None, :, None, None] + shift[None, :, None, None], 0.0)
    f = y.reshape(x.shape[0], -1)                    # PyTorch nn.Flatten (C-major)
    f_q = f.astype(jnp.bfloat16).astype(jnp.float32)
    w1_q = w1.astype(jnp.bfloat16).astype(jnp.float32)
    w2_q = w2.astype(jnp.bfloat16).astype(jnp.float32)
    h = jnp.maximum(f_q @ w1_q + b1[None, :], 0.0)
    h_q = h.astype(jnp.bfloat16).astype(jnp.float32)
    return h_q @ w2_q + b2[None, :]


def _run_case(c_in, key):
    # Spatial 16x16 so AvgPool2d(5,3) -> 4x4 and the flatten is 128*4*4 = 2048,
    # matching nn.Linear(2048, 1024) in the module.
    N, H, W = 2, 16, 16
    C_OUT, NUM_CLASSES, NC_PAD, HIDDEN, EPS = 128, 10, 128, 1024, 1e-3
    OUT_HW = (H - POOL_K) // POOL_S + 1          # 4
    P = OUT_HW * OUT_HW                          # 16
    FEAT = C_OUT * P                             # 2048
    assert FEAT == 2048

    ks = jax.random.split(key, 7)
    x = jax.random.normal(ks[0], (N, c_in, H, W), jnp.float32)

    # BasicConv2d: Conv2d(c_in,128,kernel_size=1,bias=True) + BatchNorm2d(eval) + ReLU.
    conv_w = jax.random.normal(ks[1], (C_OUT, c_in), jnp.float32) * 0.1
    conv_b = jax.random.normal(ks[2], (C_OUT,), jnp.float32) * 0.1
    bn_gamma = jnp.ones((C_OUT,), jnp.float32)
    bn_beta = jnp.zeros((C_OUT,), jnp.float32)
    bn_mean = jnp.zeros((C_OUT,), jnp.float32)
    bn_var = jnp.ones((C_OUT,), jnp.float32)
    scale = bn_gamma / jnp.sqrt(bn_var + EPS)
    shift = bn_beta + (conv_b - bn_mean) * scale

    # Classifier weights stored pre-transposed as (in, out).
    w1 = jax.random.normal(ks[3], (FEAT, HIDDEN), jnp.float32) * 0.03
    b1 = jax.random.normal(ks[4], (HIDDEN,), jnp.float32) * 0.1
    w2 = jax.random.normal(ks[5], (HIDDEN, NUM_CLASSES), jnp.float32) * 0.05
    b2 = jax.random.normal(ks[6], (NUM_CLASSES,), jnp.float32) * 0.1

    # ---- One-time host-side preprocessing -----------------------------------
    pool_mat = jnp.asarray(_make_pool_matrix(H, W, OUT_HW, OUT_HW)).astype(jnp.bfloat16)
    conv_w_scaled = (conv_w * scale[:, None]).astype(jnp.bfloat16)   # (128, C), BN folded
    # Fold the PyTorch C-major flatten into w1: w1p[p*128 + c] = w1[c*P + p].
    w1p = w1.reshape(C_OUT, P, HIDDEN).transpose(1, 0, 2).reshape(FEAT, HIDDEN)
    # Pad num_classes to a full 128-lane tile; sliced back in the wrapper.
    w2p = jnp.zeros((HIDDEN, NC_PAD), jnp.float32).at[:, :NUM_CLASSES].set(w2)
    b2p = jnp.zeros((NC_PAD,), jnp.float32).at[:NUM_CLASSES].set(b2)

    params = dict(
        pool_mat=pool_mat,
        conv_w_scaled=conv_w_scaled,
        shift=shift[None, :],
        w1_bf=w1p.astype(jnp.bfloat16), b1=b1[None, :],
        w2_bf=w2p.astype(jnp.bfloat16), b2=b2p[None, :],
    )

    out = inception_aux_forward(x, params, NUM_CLASSES)
    out = jax.block_until_ready(out)

    ref = _reference_forward(x, conv_w, conv_b,
                             (bn_gamma, bn_beta, bn_mean, bn_var),
                             w1, b1, w2, b2, EPS)

    assert out.shape == (N, NUM_CLASSES)
    # Tolerance covers bf16 pool/conv/weight streaming + MXU pass order.
    np.testing.assert_allclose(np.asarray(out), np.asarray(ref),
                               rtol=2e-2, atol=2e-2)


if __name__ == "__main__":
    key = jax.random.PRNGKey(0)
    # C_in=32 exercises the small-channel (conv-then-pool) path;
    # C_in=128 exercises the real-size (pool-then-conv) path.
    for case_idx, c_in in enumerate((32, 128)):
        _run_case(c_in, jax.random.fold_in(key, case_idx))
    print("KERNEL_OK")
</pallas_src>

<mosaic_0001>
module attributes {stable_mosaic.version = 11 : i64} {
  func.func @_pool_conv_bn_relu_kernel(%arg0: i32, %arg1: memref<16x256xbf16, #tpu.memory_space<vmem>>, %arg2: memref<1x32x256xf32, #tpu.memory_space<vmem>>, %arg3: memref<128x32xbf16, #tpu.memory_space<vmem>>, %arg4: memref<1x128xf32, #tpu.memory_space<vmem>>, %arg5: memref<1x16x128xbf16, #tpu.memory_space<vmem>>) attributes {dimension_semantics = [#tpu.dimension_semantics<parallel>], iteration_bounds = array<i64: 2>, scalar_prefetch = 0 : i64, scratch_operands = 0 : i64, tpu.core_type = #tpu.core_type<tc>, window_params = [{pipeline_mode = #tpu.pipeline_mode<synchronous>, transform_indices = @transform_0, window_bounds = array<i64: 16, 256>}, {transform_indices = @transform_1, window_bounds = array<i64: 1, 32, 256>}, {pipeline_mode = #tpu.pipeline_mode<synchronous>, transform_indices = @transform_2, window_bounds = array<i64: 128, 32>}, {pipeline_mode = #tpu.pipeline_mode<synchronous>, transform_indices = @transform_3, window_bounds = array<i64: 1, 128>}, {transform_indices = @transform_4, window_bounds = array<i64: 1, 16, 128>}]} {
    %c0 = arith.constant 0 : index
    %c0_0 = arith.constant 0 : index
    %c0_1 = arith.constant 0 : index
    %0 = vector.load %arg2[%c0, %c0_0, %c0_1] : memref<1x32x256xf32, #tpu.memory_space<vmem>>, vector<1x32x256xf32>
    %1 = vector.shape_cast %0 : vector<1x32x256xf32> to vector<32x256xf32>
    %2 = arith.truncf %1 : vector<32x256xf32> to vector<32x256xbf16>
    %c0_2 = arith.constant 0 : index
    %c0_3 = arith.constant 0 : index
    %3 = vector.load %arg3[%c0_2, %c0_3] : memref<128x32xbf16, #tpu.memory_space<vmem>>, vector<128x32xbf16>
    %cst = arith.constant dense<0.000000e+00> : vector<128x256xf32>
    %4 = tpu.matmul %3, %2, %cst {dimension_numbers = #tpu.dot_dimension_numbers<[1], [0], [0], [1], [0, 0, 1, 1], [], []>} : vector<128x32xbf16>, vector<32x256xbf16>, vector<128x256xf32> -> vector<128x256xf32>
    %c0_4 = arith.constant 0 : index
    %c0_5 = arith.constant 0 : index
    %5 = vector.load %arg1[%c0_4, %c0_5] : memref<16x256xbf16, #tpu.memory_space<vmem>>, vector<16x256xbf16>
    %6 = arith.truncf %4 : vector<128x256xf32> to vector<128x256xbf16>
    %cst_6 = arith.constant dense<0.000000e+00> : vector<16x128xf32>
    %7 = tpu.matmul %5, %6, %cst_6 {dimension_numbers = #tpu.dot_dimension_numbers<[1], [1], [0], [0], [0, 0, 1, 0], [], []>} : vector<16x256xbf16>, vector<128x256xbf16>, vector<16x128xf32> -> vector<16x128xf32>
    %c0_7 = arith.constant 0 : index
    %c0_8 = arith.constant 0 : index
    %8 = vector.load %arg4[%c0_7, %c0_8] : memref<1x128xf32, #tpu.memory_space<vmem>>, vector<1x128xf32>
    %9 = vector.broadcast %8 : vector<1x128xf32> to vector<16x128xf32>
    %10 = arith.addf %7, %9 : vector<16x128xf32>
    %cst_9 = arith.constant 0.000000e+00 : f32
    %11 = vector.broadcast %cst_9 : f32 to vector<16x128xf32>
    %12 = arith.maximumf %10, %11 : vector<16x128xf32>
    %13 = arith.truncf %12 : vector<16x128xf32> to vector<16x128xbf16>
    %c0_10 = arith.constant 0 : index
    %c0_11 = arith.constant 0 : index
    %c0_12 = arith.constant 0 : index
    %14 = vector.load %arg5[%c0_10, %c0_11, %c0_12] : memref<1x16x128xbf16, #tpu.memory_space<vmem>>, vector<1x16x128xbf16>
    %15 = vector.shape_cast %14 : vector<1x16x128xbf16> to vector<16x128xbf16>
    %16 = vector.shape_cast %13 : vector<16x128xbf16> to vector<1x16x128xbf16>
    tpu.vector_store %arg5[%c0_10, %c0_11, %c0_12], %16 {strides = array<i32>} : memref<1x16x128xbf16, #tpu.memory_space<vmem>>, vector<1x16x128xbf16>,
    return
  }
  func.func @transform_0(%arg0: i32) -> (i32, i32) {
    %c0_i32 = arith.constant 0 : i32
    %c0_i32_0 = arith.constant 0 : i32
    %c0_i32_1 = arith.constant 0 : i32
    return %c0_i32, %c0_i32_0 : i32, i32
  }
  func.func @transform_1(%arg0: i32) -> (i32, i32, i32) {
    %c0_i32 = arith.constant 0 : i32
    %c0_i32_0 = arith.constant 0 : i32
    %c0_i32_1 = arith.constant 0 : i32
    return %arg0, %c0_i32, %c0_i32_0 : i32, i32, i32
  }
  func.func @transform_2(%arg0: i32) -> (i32, i32) {
    %c0_i32 = arith.constant 0 : i32
    %c0_i32_0 = arith.constant 0 : i32
    %c0_i32_1 = arith.constant 0 : i32
    return %c0_i32, %c0_i32_0 : i32, i32
  }
  func.func @transform_3(%arg0: i32) -> (i32, i32) {
    %c0_i32 = arith.constant 0 : i32
    %c0_i32_0 = arith.constant 0 : i32
    %c0_i32_1 = arith.constant 0 : i32
    return %c0_i32, %c0_i32_0 : i32, i32
  }
  func.func @transform_4(%arg0: i32) -> (i32, i32, i32) {
    %c0_i32 = arith.constant 0 : i32
    %c0_i32_0 = arith.constant 0 : i32
    %c0_i32_1 = arith.constant 0 : i32
    return %arg0, %c0_i32, %c0_i32_0 : i32, i32, i32
  }
}

</mosaic_0001>

<llo_original>
// kernel: tpu_custom_call.1
$region0: #{tpu_custom_call.1}
  #allocation0 [shape = 'u32[]', space=smem, size = 0x4, offset = 0x4, fixed_abs, tag = 'smem constant byte address 0x4 - core index']
  #allocation1 [shape = 'u32[144,128]{1,0:T(1,128)}', space=vmem, size = 0x12000, scoped, tag = 'internal scratch']
  %s0 = inlined_call_operand.vmem [shape: bf16[16,256], index: 0, kind: input, shape index: {}]
  %s1 = inlined_call_operand.hbm [shape: f32[2,32,256], index: 1, kind: input, shape index: {}]
  %s2 = inlined_call_operand.vmem [shape: bf16[128,32], index: 2, kind: input, shape index: {}]
  %s3 = inlined_call_operand.vmem [shape: f32[1,128], index: 3, kind: input, shape index: {}]
  %s4 = inlined_call_operand.hbm [shape: bf16[2,16,128], index: 4, kind: output, shape index: {}]
  %s5 = sld [smem:[#allocation0]]
  $region53: #{tpu_custom_call.1} parent=0
    _
  %s7 = ssub.s32 1, %s5
  %s8 = scalar_select 0, %s7, %s5
  $region1: #{tpu_custom_call.1} parent=0
    #allocation2 [shape = 'u8[65536]{0}', space=vmem, size = 0x10000, scoped, tag = 'input window, operand 1']
    #allocation3 [shape = 's32[2]{0}', space=sflag, size = 0x8, scoped, tag = 'scoped memory for tpu_custom_call.1']
    #allocation4 [shape = 's32[2]{0}', space=sflag, size = 0x8, scoped, tag = 'scoped memory for tpu_custom_call.1']
    #allocation5 [shape = 'u8[8192]{0}', space=vmem, size = 0x2000, scoped, tag = 'output window, operand 0']
    %9 = vsyncpa [#allocation3], 0
    %s10 = scalar_lea.sflag [#allocation3], 1
    %11 = vsyncpa %s10, 0
    %12 = vsyncpa [#allocation4], 0
    %s13 = scalar_lea.sflag [#allocation4], 1
    %14 = vsyncpa %s13, 0
    loop: start=0, step=1, limit=4
    $region2: #{tpu_custom_call.1} parent=1 // loop_pre_header
      _
    $region3: #{tpu_custom_call.1} parent=1 // loop_header
      %s16 = sphi 0, %s20
      %p17 = scmp.ge.s32.totalorder %s16, 4
      %s24 = sphi 0, %s24
      %s26 = sphi 0, %s24
      %s27 = sphi 0, %s26
      %s41 = sphi 0, %s27
      %s47 = sphi 0, %s49
      %s50 = sphi 0, %s47
      %s51 = sphi 0, %s50
      %s67 = sphi 0, %s51
      %s71 = sphi 0, %s71
      %s73 = sphi 0, %s71
      %s74 = sphi 0, %s73
      %s88 = sphi 0, %s74
      %s92 = sphi 0, %s92
      %s94 = sphi 0, %s92
      %s95 = sphi 0, %s94
      %s109 = sphi 0, %s95
      %s115 = sphi 0, %s117
      %s118 = sphi 0, %s115
      %s119 = sphi 0, %s118
      %s135 = sphi 0, %s119
    $region4: #{tpu_custom_call.1} parent=1 // loop_header_branch
      %19 = sbr.rel (%p17) target = $region8
    $region5: #{tpu_custom_call.1} parent=1 // loop_body
      %s21 = ssub.s32 %s16, 1
      %s22 = ssub.s32 %s16, 2
      %s23 = sadd.s32 %s16, 1
      %s25 = sadd.s32 %s24, 1
      %p28 = scmp.eq.s32.totalorder %s16, 1
      %p29 = scmp.ne.s32.totalorder %s24, %s26
      %p30 = scmp.eq.s32.totalorder %s16, 0
      %p31 = por %p29, %p30
      %p32 = scmp.ne.s32.totalorder %s24, %s26
      %p33 = scmp.eq.s32.totalorder %s21, 1
      %p34 = por %p32, %p33
      %p35 = scmp.ne.s32.totalorder %s26, %s27
      %p36 = scmp.eq.s32.totalorder %s21, 0
      %p37 = por %p35, %p36
      %p38 = scmp.ne.s32.totalorder %s26, %s27
      %p39 = scmp.eq.s32.totalorder %s22, 1
      %p40 = por %p38, %p39
      %p42 = scmp.ne.s32.totalorder %s27, %s41
      %p43 = scmp.eq.s32.totalorder %s22, 0
      %p44 = por %p42, %p43
      %s45 = ssub.s32 %s16, %s23
      %p46 = scmp.eq.s32.totalorder %s45, 0
      %s48 = sadd.s32 %s47, 1
      %s49 = scalar_select %p46, %s47, %s48
      %p52 = pneg %p46
      %p53 = scmp.eq.s32.totalorder %s16, 1
      %p54 = por %p52, %p53
      %p55 = scmp.ne.s32.totalorder %s47, %s50
      %p56 = scmp.eq.s32.totalorder %s16, 0
      %p57 = por %p55, %p56
      %p58 = scmp.ne.s32.totalorder %s47, %s50
      %p59 = scmp.eq.s32.totalorder %s21, 1
      %p60 = por %p58, %p59
      %p61 = scmp.ne.s32.totalorder %s50, %s51
      %p62 = scmp.eq.s32.totalorder %s21, 0
      %p63 = por %p61, %p62
      %p64 = scmp.ne.s32.totalorder %s50, %s51
      %p65 = scmp.eq.s32.totalorder %s22, 1
      %p66 = por %p64, %p65
      %p68 = scmp.ne.s32.totalorder %s51, %s67
      %p69 = scmp.eq.s32.totalorder %s22, 0
      %p70 = por %p68, %p69
      %s72 = sadd.s32 %s71, 1
      %p75 = scmp.eq.s32.totalorder %s16, 1
      %p76 = scmp.ne.s32.totalorder %s71, %s73
      %p77 = scmp.eq.s32.totalorder %s16, 0
      %p78 = por %p76, %p77
      %p79 = scmp.ne.s32.totalorder %s71, %s73
      %p80 = scmp.eq.s32.totalorder %s21, 1
      %p81 = por %p79, %p80
      %p82 = scmp.ne.s32.totalorder %s73, %s74
      %p83 = scmp.eq.s32.totalorder %s21, 0
      %p84 = por %p82, %p83
      %p85 = scmp.ne.s32.totalorder %s73, %s74
      %p86 = scmp.eq.s32.totalorder %s22, 1
      %p87 = por %p85, %p86
      %p89 = scmp.ne.s32.totalorder %s74, %s88
      %p90 = scmp.eq.s32.totalorder %s22, 0
      %p91 = por %p89, %p90
      %s93 = sadd.s32 %s92, 1
      %p96 = scmp.eq.s32.totalorder %s16, 1
      %p97 = scmp.ne.s32.totalorder %s92, %s94
      %p98 = scmp.eq.s32.totalorder %s16, 0
      %p99 = por %p97, %p98
      %p100 = scmp.ne.s32.totalorder %s92, %s94
      %p101 = scmp.eq.s32.totalorder %s21, 1
      %p102 = por %p100, %p101
      %p103 = scmp.ne.s32.totalorder %s94, %s95
      %p104 = scmp.eq.s32.totalorder %s21, 0
      %p105 = por %p103, %p104
      %p106 = scmp.ne.s32.totalorder %s94, %s95
      %p107 = scmp.eq.s32.totalorder %s22, 1
      %p108 = por %p106, %p107
      %p110 = scmp.ne.s32.totalorder %s95, %s109
      %p111 = scmp.eq.s32.totalorder %s22, 0
      %p112 = por %p110, %p111
      %s113 = ssub.s32 %s16, %s23
      %p114 = scmp.eq.s32.totalorder %s113, 0
      %s116 = sadd.s32 %s115, 1
      %s117 = scalar_select %p114, %s115, %s116
      %p120 = pneg %p114
      %p121 = scmp.eq.s32.totalorder %s16, 1
      %p122 = por %p120, %p121
      %p123 = scmp.ne.s32.totalorder %s115, %s118
      %p124 = scmp.eq.s32.totalorder %s16, 0
      %p125 = por %p123, %p124
      %p126 = scmp.ne.s32.totalorder %s115, %s118
      %p127 = scmp.eq.s32.totalorder %s21, 1
      %p128 = por %p126, %p127
      %p129 = scmp.ne.s32.totalorder %s118, %s119
      %p130 = scmp.eq.s32.totalorder %s21, 0
      %p131 = por %p129, %p130
      %p132 = scmp.ne.s32.totalorder %s118, %s119
      %p133 = scmp.eq.s32.totalorder %s22, 1
      %p134 = por %p132, %p133
      %p136 = scmp.ne.s32.totalorder %s119, %s135
      %p137 = scmp.eq.s32.totalorder %s22, 0
      %p138 = por %p136, %p137
      %p139 = scmp.le.s32.totalorder 1, %s16
      %p140 = scmp.lt.s32.totalorder %s16, 3
      %p141 = pnand %p139, %p140
      %p142 = pneg %p141
      // Predicated region
      $region9: #{tpu_custom_call.1} parent=5 // pred_check
        _
      $region10: #{tpu_custom_call.1} parent=5 // pred_check_branch
        %144 = sbr.rel (%p141) target = $region12
      $region11: #{tpu_custom_call.1} parent=5 // pred_region
        %s145 = ssub.s32 %s16, 1
        // Predicated region
        $region13: #{tpu_custom_call.1} parent=11 // pred_check
          %p146 = pneg %p37
        $region14: #{tpu_custom_call.1} parent=11 // pred_check_branch
          %148 = sbr.rel (%p146) target = $region16
        $region15: #{tpu_custom_call.1} parent=11 // pred_region
          _
        $region16: #{tpu_custom_call.1} parent=11 // pred_fallthru
          _
        // Predicated region
        $region17: #{tpu_custom_call.1} parent=11 // pred_check
          %p149 = pneg %p84
        $region18: #{tpu_custom_call.1} parent=11 // pred_check_branch
          %151 = sbr.rel (%p149) target = $region20
        $region19: #{tpu_custom_call.1} parent=11 // pred_region
          _
        $region20: #{tpu_custom_call.1} parent=11 // pred_fallthru
          _
        // Predicated region
        $region21: #{tpu_custom_call.1} parent=11 // pred_check
          %p152 = pneg %p105
        $region22: #{tpu_custom_call.1} parent=11 // pred_check_branch
          %154 = sbr.rel (%p152) target = $region24
        $region23: #{tpu_custom_call.1} parent=11 // pred_region
          _
        $region24: #{tpu_custom_call.1} parent=11 // pred_fallthru
          _
      $region12: #{tpu_custom_call.1} parent=5 // pred_fallthru
        _
      %p155 = scmp.lt.s32.totalorder %s16, 2
      // Predicated region
      $region25: #{tpu_custom_call.1} parent=5 // pred_check
        %p156 = pneg %p155
      $region26: #{tpu_custom_call.1} parent=5 // pred_check_branch
        %158 = sbr.rel (%p156) target = $region28
      $region27: #{tpu_custom_call.1} parent=5 // pred_region
        // Predicated region
        $region29: #{tpu_custom_call.1} parent=27 // pred_check
          %p159 = pneg %p57
        $region30: #{tpu_custom_call.1} parent=27 // pred_check_branch
          %161 = sbr.rel (%p159) target = $region32
        $region31: #{tpu_custom_call.1} parent=27 // pred_region
          %s162 = sand.u32 %s47, 1
          %s163 = scalar_lea.sflag [#allocation3], %s162
          %s164 = sand.u32 %s47, 1
          %s165 = smul.addr %s164, 64
          %s166 = scalar_lea.vmem [#allocation2], %s165
          %s168 = ssub.s32 1024, 1024
          %169 = vsyncadd %s163, %s168
          %s170 = smul.addr %s16, 8
          %s171 = smul.addr %s170, 128
          %s172 = scalar_lea.hbm %s1, %s171
          %s173 = sshll.u32 %s166, 4
          %s174 = int_to_ptr.vmem [resolvable:$true] %s173
          %179 = dma.hbm_to_vmem [thread:$0]  %s172, 1024, %s174, %s163, 256, 256, 16
        $region32: #{tpu_custom_call.1} parent=27 // pred_fallthru
          _
      $region28: #{tpu_custom_call.1} parent=5 // pred_fallthru
        _
      %p180 = scmp.le.s32.totalorder 1, %s16
      %p181 = scmp.lt.s32.totalorder %s16, 3
      %p182 = pnand %p180, %p181
      %p183 = pneg %p182
      // Predicated region
      $region33: #{tpu_custom_call.1} parent=5 // pred_check
        _
      $region34: #{tpu_custom_call.1} parent=5 // pred_check_branch
        %185 = sbr.rel (%p182) target = $region36
      $region35: #{tpu_custom_call.1} parent=5 // pred_region
        %s186 = ssub.s32 %s16, 1
        %s187 = sand.u32 %s50, 1
        %s188 = scalar_lea.sflag [#allocation3], %s187
        %s189 = sand.u32 %s50, 1
        %s190 = smul.addr %s189, 64
        %s191 = scalar_lea.vmem [#allocation2], %s190
        // Predicated region
        $region37: #{tpu_custom_call.1} parent=35 // pred_check
          %p192 = pneg %p63
        $region38: #{tpu_custom_call.1} parent=35 // pred_check_branch
          %194 = sbr.rel (%p192) target = $region40
        $region39: #{tpu_custom_call.1} parent=35 // pred_region
          %195 = dma.done %s188, 1024
        $region40: #{tpu_custom_call.1} parent=35 // pred_fallthru
          _
        %p196 = pneg %p37
        %p197 = pneg %p34
        %s198 = sand.u32 %s50, 1
        %s199 = scalar_lea.sflag [#allocation3], %s198
        %s200 = sand.u32 %s50, 1
        %s201 = smul.addr %s200, 64
        %s202 = scalar_lea.vmem [#allocation2], %s201
        %p203 = pneg %p63
        %p204 = pneg %p60
        %p205 = pneg %p84
        %p206 = pneg %p81
        %p207 = pneg %p105
        %p208 = pneg %p102
        %p209 = pneg %p131
        %p210 = pneg %p128
        %s211 = sand.u32 %s118, 1
        %s212 = scalar_lea.sflag [#allocation4], %s211
        %s213 = sand.u32 %s118, 1
        %s214 = smul.addr %s213, 8
        %s215 = scalar_lea.vmem [#allocation5], %s214
        %v217 = vld [vmem:[%s191] sm:$0xff]
        %v218 = vld [vmem:[%s191 + $0x8] sm:$0xff]
        %v219 = vld [vmem:[%s191 + $0x10] sm:$0xff]
        %v220 = vld [vmem:[%s191 + $0x18] sm:$0xff]
        %v221 = vld [vmem:[%s191 + $0x20] sm:$0xff]
        %v222 = vld [vmem:[%s191 + $0x28] sm:$0xff]
        %v223 = vld [vmem:[%s191 + $0x30] sm:$0xff]
        %v224 = vld [vmem:[%s191 + $0x38] sm:$0xff]
        %v225 = vpack.c.bf16 %v219, %v217
        %v226 = vpack.c.bf16 %v220, %v218
        %v227 = vpack.c.bf16 %v223, %v221
        %v228 = vpack.c.bf16 %v224, %v222
        %v229 = vld [vmem:[%s2] sm:$0xf]
        %v230 = vld [vmem:[%s2 + $0x4] sm:$0xf]
        %v231 = vld [vmem:[%s2 + $0x8] sm:$0xf]
        %v232 = vld [vmem:[%s2 + $0xc] sm:$0xf]
        %v233 = vld [vmem:[%s2 + $0x10] sm:$0xf]
        %v234 = vld [vmem:[%s2 + $0x14] sm:$0xf]
        %v235 = vld [vmem:[%s2 + $0x18] sm:$0xf]
        %v236 = vld [vmem:[%s2 + $0x1c] sm:$0xf]
        %v237 = vld [vmem:[%s2 + $0x20] sm:$0xf]
        %v238 = vld [vmem:[%s2 + $0x24] sm:$0xf]
        %v239 = vld [vmem:[%s2 + $0x28] sm:$0xf]
        %v240 = vld [vmem:[%s2 + $0x2c] sm:$0xf]
        %v241 = vld [vmem:[%s2 + $0x30] sm:$0xf]
        %v242 = vld [vmem:[%s2 + $0x34] sm:$0xf]
        %v243 = vld [vmem:[%s2 + $0x38] sm:$0xf]
        %v244 = vld [vmem:[%s2 + $0x3c] sm:$0xf]
        %v261 = vunpack.c.l.b16 %v229
        %v262 = vunpack.c.l.b16 %v230
        %v263 = vunpack.c.l.b16 %v231
        %v264 = vunpack.c.l.b16 %v232
        %v265 = vunpack.c.l.b16 %v233
        %v266 = vunpack.c.l.b16 %v234
        %v267 = vunpack.c.l.b16 %v235
        %v268 = vunpack.c.l.b16 %v236
        %v269 = vunpack.c.l.b16 %v237
        %v270 = vunpack.c.l.b16 %v238
        %v271 = vunpack.c.l.b16 %v239
        %v272 = vunpack.c.l.b16 %v240
        %v273 = vunpack.c.l.b16 %v241
        %v274 = vunpack.c.l.b16 %v242
        %v275 = vunpack.c.l.b16 %v243
        %v276 = vunpack.c.l.b16 %v244
        %v277 = vpack.c.b16 %v262, %v261
        %v278 = vpack.c.b16 %v264, %v263
        %v279 = vpack.c.b16 %v266, %v265
        %v280 = vpack.c.b16 %v268, %v267
        %v281 = vpack.c.b16 %v270, %v269
        %v282 = vpack.c.b16 %v272, %v271
        %v283 = vpack.c.b16 %v274, %v273
        %v284 = vpack.c.b16 %v276, %v275
        %vm285 = vcmask 261120
        %v287 = vsel %vm285, %v277, 0
        %v290 = vsel %vm285, %v278, 0
        %v293 = vsel %vm285, %v279, 0
        %v296 = vsel %vm285, %v280, 0
        %v299 = vsel %vm285, %v281, 0
        %v302 = vsel %vm285, %v282, 0
        %v305 = vsel %vm285, %v283, 0
        %v308 = vsel %vm285, %v284, 0
        %310 = vmatprep.subr.bf16.mxu0 %v226
        %311 = vmatpush1.bf16.msra.mxu0 %v225
        %312 = vmatprep.subr.bf16.mxu0 %v228
        %313 = vmatpush1.bf16.msra.mxu0 %v227
        %314 = vmatprep.subr.bf16.mxu0 0
        %315 = vmatpush1.bf16.msra.mxu0 0
        %316 = vmatprep.subr.bf16.mxu0 0
        %317 = vmatpush1.bf16.msra.mxu0 0
        %318 = vmatprep.subr.bf16.mxu0 0
        %319 = vmatpush1.bf16.msra.mxu0 0
        %320 = vmatprep.subr.bf16.mxu0 0
        %321 = vmatpush1.bf16.msra.mxu0 0
        %322 = vmatprep.subr.bf16.mxu0 0
        %323 = vmatpush1.bf16.msra.mxu0 0
        %324 = vmatprep.subr.bf16.mxu0 0
        %325 = vmatpush1.bf16.msra.mxu0 0
        %326 = vmatprep.subr.bf16.mxu0 0
        %327 = vmatpush1.bf16.msra.mxu0 0
        %328 = vmatprep.subr.bf16.mxu0 0
        %329 = vmatpush1.bf16.msra.mxu0 0
        %330 = vmatprep.subr.bf16.mxu0 0
        %331 = vmatpush1.bf16.msra.mxu0 0
        %332 = vmatprep.subr.bf16.mxu0 0
        %333 = vmatpush1.bf16.msra.mxu0 0
        %334 = vmatprep.subr.bf16.mxu0 0
        %335 = vmatpush1.bf16.msra.mxu0 0
        %336 = vmatprep.subr.bf16.mxu0 0
        %337 = vmatpush1.bf16.msra.mxu0 0
        %338 = vmatprep.subr.bf16.mxu0 0
        %339 = vmatpush1.bf16.msra.mxu0 0
        %340 = vmatprep.subr.bf16.mxu0 0
        %341 = vmatpush1.bf16.msra.mxu0 0
        %342 = vmatprep.mubr.bf16.mxu0 0
        %343 = vmatmul.mubr.bf16.gmra.mrb[0].mxu0 %v287
        %v344 = vpop.f32.mrb[0].mxu0
        %v345 = vadd.f32 0.0, %v344
        %v346 = vpop.f32.mrb[0].mxu0
        %v347 = vadd.f32 0.0, %v346
        %v348 = vpop.f32.mrb[0].mxu0
        %v349 = vadd.f32 0.0, %v348
        %v350 = vpop.f32.mrb[0].mxu0
        %v351 = vadd.f32 0.0, %v350
        %352 = vmatprep.mubr.bf16.mxu0 0
        %353 = vmatmul.mubr.bf16.gmra.mrb[0].mxu0 %v290
        %v354 = vpop.f32.mrb[0].mxu0
        %v355 = vadd.f32 0.0, %v354
        %v356 = vpop.f32.mrb[0].mxu0
        %v357 = vadd.f32 0.0, %v356
        %v358 = vpop.f32.mrb[0].mxu0
        %v359 = vadd.f32 0.0, %v358
        %v360 = vpop.f32.mrb[0].mxu0
        %v361 = vadd.f32 0.0, %v360
        %362 = vmatprep.mubr.bf16.mxu0 0
        %363 = vmatmul.mubr.bf16.gmra.mrb[0].mxu0 %v293
        %v364 = vpop.f32.mrb[0].mxu0
        %v365 = vadd.f32 0.0, %v364
        %v366 = vpop.f32.mrb[0].mxu0
        %v367 = vadd.f32 0.0, %v366
        %v368 = vpop.f32.mrb[0].mxu0
        %v369 = vadd.f32 0.0, %v368
        %v370 = vpop.f32.mrb[0].mxu0
        %v371 = vadd.f32 0.0, %v370
        %372 = vmatprep.mubr.bf16.mxu0 0
        %373 = vmatmul.mubr.bf16.gmra.mrb[0].mxu0 %v296
        %v374 = vpop.f32.mrb[0].mxu0
        %v375 = vadd.f32 0.0, %v374
        %v376 = vpop.f32.mrb[0].mxu0
        %v377 = vadd.f32 0.0, %v376
        %v378 = vpop.f32.mrb[0].mxu0
        %v379 = vadd.f32 0.0, %v378
        %v380 = vpop.f32.mrb[0].mxu0
        %v381 = vadd.f32 0.0, %v380
        %382 = vmatprep.mubr.bf16.mxu0 0
        %383 = vmatmul.mubr.bf16.gmra.mrb[0].mxu0 %v299
        %v384 = vpop.f32.mrb[0].mxu0
        %v385 = vadd.f32 0.0, %v384
        %v386 = vpop.f32.mrb[0].mxu0
        %v387 = vadd.f32 0.0, %v386
        %v388 = vpop.f32.mrb[0].mxu0
        %v389 = vadd.f32 0.0, %v388
        %v390 = vpop.f32.mrb[0].mxu0
        %v391 = vadd.f32 0.0, %v390
        %392 = vmatprep.mubr.bf16.mxu0 0
        %393 = vmatmul.mubr.bf16.gmra.mrb[0].mxu0 %v302
        %v394 = vpop.f32.mrb[0].mxu0
        %v395 = vadd.f32 0.0, %v394
        %v396 = vpop.f32.mrb[0].mxu0
        %v397 = vadd.f32 0.0, %v396
        %v398 = vpop.f32.mrb[0].mxu0
        %v399 = vadd.f32 0.0, %v398
        %v400 = vpop.f32.mrb[0].mxu0
        %v401 = vadd.f32 0.0, %v400
        %402 = vmatprep.mubr.bf16.mxu0 0
        %403 = vmatmul.mubr.bf16.gmra.mrb[0].mxu0 %v305
        %v404 = vpop.f32.mrb[0].mxu0
        %v405 = vadd.f32 0.0, %v404
        %v406 = vpop.f32.mrb[0].mxu0
        %v407 = vadd.f32 0.0, %v406
        %v408 = vpop.f32.mrb[0].mxu0
        %v409 = vadd.f32 0.0, %v408
        %v410 = vpop.f32.mrb[0].mxu0
        %v411 = vadd.f32 0.0, %v410
        %412 = vmatprep.mubr.bf16.mxu0 0
        %413 = vmatmul.mubr.bf16.gmra.mrb[0].mxu0 %v308
        %v414 = vpop.f32.mrb[0].mxu0
        %v415 = vadd.f32 0.0, %v414
        %v416 = vpop.f32.mrb[0].mxu0
        %v417 = vadd.f32 0.0, %v416
        %v418 = vpop.f32.mrb[0].mxu0
        %v419 = vadd.f32 0.0, %v418
        %v420 = vpop.f32.mrb[0].mxu0
        %v421 = vadd.f32 0.0, %v420
        %422 = vdwg.mxu0
        %v423 = vld [vmem:[%s0] sm:$0xff]
        %v424 = vld [vmem:[%s0 + $0x8] sm:$0xff]
        %v425 = vpack.c.bf16 %v349, %v345
        %v426 = vpack.c.bf16 %v351, %v347
        %v427 = vpack.c.bf16 %v359, %v355
        %v428 = vpack.c.bf16 %v361, %v357
        %v429 = vpack.c.bf16 %v369, %v365
        %v430 = vpack.c.bf16 %v371, %v367
        %v431 = vpack.c.bf16 %v379, %v375
        %v432 = vpack.c.bf16 %v381, %v377
        %v433 = vpack.c.bf16 %v389, %v385
        %v434 = vpack.c.bf16 %v391, %v387
        %v435 = vpack.c.bf16 %v399, %v395
        %v436 = vpack.c.bf16 %v401, %v397
        %v437 = vpack.c.bf16 %v409, %v405
        %v438 = vpack.c.bf16 %v411, %v407
        %v439 = vpack.c.bf16 %v419, %v415
        %v440 = vpack.c.bf16 %v421, %v417
        %v441 = vld [vmem:[%s3] sm:$0x1]
        %v443 = vlaneseq
        %v444 = vshrl.u32 %v443, 7
        %v445 = vsub.s32 0, %v444
        %v446 = vrot.slane %v441, %v445
        %v450 = vunpack.c.l.b16 %v423
        %v451 = vunpack.c.h.b16 %v423
        %v452 = vunpack.c.l.b16 %v424
        %v453 = vunpack.c.h.b16 %v424
        %v454 = vpack.c.b16 %v452, %v450
        %v455 = vpack.c.b16 %v453, %v451
        %458 = vmatprep.subr.bf16.mxu0 %v426
        %459 = vmatpush1.bf16.xpose.msra.mxu0 %v425
        %460 = vmatprep.subr.bf16.mxu0 %v428
        %461 = vmatpush1.bf16.xpose.msra.mxu0 %v427
        %462 = vmatprep.subr.bf16.mxu0 %v430
        %463 = vmatpush1.bf16.xpose.msra.mxu0 %v429
        %464 = vmatprep.subr.bf16.mxu0 %v432
        %465 = vmatpush1.bf16.xpose.msra.mxu0 %v431
        %466 = vmatprep.subr.bf16.mxu0 %v434
        %467 = vmatpush1.bf16.xpose.msra.mxu0 %v433
        %468 = vmatprep.subr.bf16.mxu0 %v436
        %469 = vmatpush1.bf16.xpose.msra.mxu0 %v435
        %470 = vmatprep.subr.bf16.mxu0 %v438
        %471 = vmatpush1.bf16.xpose.msra.mxu0 %v437
        %472 = vmatprep.subr.bf16.mxu0 %v440
        %473 = vmatpush1.bf16.xpose.msra.mxu0 %v439
        %474 = vmatprep.subr.bf16.mxu0 0
        %475 = vmatpush1.bf16.xpose.msra.mxu0 0
        %476 = vmatprep.subr.bf16.mxu0 0
        %477 = vmatpush1.bf16.xpose.msra.mxu0 0
        %478 = vmatprep.subr.bf16.mxu0 0
        %479 = vmatpush1.bf16.xpose.msra.mxu0 0
        %480 = vmatprep.subr.bf16.mxu0 0
        %481 = vmatpush1.bf16.xpose.msra.mxu0 0
        %482 = vmatprep.subr.bf16.mxu0 0
        %483 = vmatpush1.bf16.xpose.msra.mxu0 0
        %484 = vmatprep.subr.bf16.mxu0 0
        %485 = vmatpush1.bf16.xpose.msra.mxu0 0
        %486 = vmatprep.subr.bf16.mxu0 0
        %487 = vmatpush1.bf16.xpose.msra.mxu0 0
        %488 = vmatprep.subr.bf16.mxu0 0
        %489 = vmatpush1.bf16.xpose.msra.mxu0 0
        %490 = vmatprep.mubr.bf16.mxu0 %v455
        %491 = vmatmul.mubr.bf16.gmra.mrb[0].mxu0 %v454
        %v492 = vpop.f32.mrb[0].mxu0
        %v493 = vadd.f32 %v446, %v492
        %v494 = vpop.f32.mrb[0].mxu0
        %v495 = vpop.f32.mrb[0].mxu0
        %v496 = vadd.f32 %v446, %v495
        %v497 = vpop.f32.mrb[0].mxu0
        %498 = vdwg.mxu0
        %v499 = vmax.f32 %v493, 0.0
        %v500 = vmax.f32 %v496, 0.0
        %v501 = vpack.c.bf16 %v500, %v499
        %v503 = vunpack.c.l.b16 %v501
        %v504 = vunpack.c.h.b16 %v501
        %v505 = vpack.c.b16 %v503, %v503
        %v506 = vpack.c.b16 %v504, %v504
        %509 = vst [vmem:[%s215] sm:$0xf] %v505
        %510 = vst [vmem:[%s215 + $0x4] sm:$0xf] %v506
        %s511 = sand.u32 %s118, 1
        %s512 = scalar_lea.sflag [#allocation4], %s511
        %s513 = sand.u32 %s118, 1
        %s514 = smul.addr %s513, 8
        %s515 = scalar_lea.vmem [#allocation5], %s514
        // Predicated region
        $region41: #{tpu_custom_call.1} parent=35 // pred_check
          %p516 = pneg %p128
        $region42: #{tpu_custom_call.1} parent=35 // pred_check_branch
          %518 = sbr.rel (%p516) target = $region44
        $region43: #{tpu_custom_call.1} parent=35 // pred_region
          %s520 = ssub.s32 128, 128
          %521 = vsyncadd %s512, %s520
          %s522 = smul.addr %s21, 2
          %s523 = smul.addr %s522, 64
          %s524 = scalar_lea.hbm %s4, %s523
          %s525 = sshll.u32 %s515, 4
          %s526 = int_to_ptr.vmem [resolvable:$true] %s525
          %531 = dma.vmem_to_hbm [thread:$0]  %s526, 128, %s524, %s512, 64, 64, 4
        $region44: #{tpu_custom_call.1} parent=35 // pred_fallthru
          _
      $region36: #{tpu_custom_call.1} parent=5 // pred_fallthru
        _
      %p532 = scmp.le.s32.totalorder 2, %s16
      // Predicated region
      $region45: #{tpu_custom_call.1} parent=5 // pred_check
        %p533 = pneg %p532
      $region46: #{tpu_custom_call.1} parent=5 // pred_check_branch
        %535 = sbr.rel (%p533) target = $region48
      $region47: #{tpu_custom_call.1} parent=5 // pred_region
        %s536 = ssub.s32 %s16, 2
        // Predicated region
        $region49: #{tpu_custom_call.1} parent=47 // pred_check
          %p537 = pneg %p134
        $region50: #{tpu_custom_call.1} parent=47 // pred_check_branch
          %539 = sbr.rel (%p537) target = $region52
        $region51: #{tpu_custom_call.1} parent=47 // pred_region
          %s540 = sand.u32 %s119, 1
          %s541 = scalar_lea.sflag [#allocation4], %s540
          %s542 = sand.u32 %s119, 1
          %s543 = smul.addr %s542, 8
          %s544 = scalar_lea.vmem [#allocation5], %s543
          %545 = dma.done %s541, 128
        $region52: #{tpu_custom_call.1} parent=47 // pred_fallthru
          _
      $region48: #{tpu_custom_call.1} parent=5 // pred_fallthru
        _
    $region6: #{tpu_custom_call.1} parent=1 // loop_footer
      %s20 = sadd.s32 1, %s16
    $region7: #{tpu_custom_call.1} parent=1 // loop_footer_branch
      %15 = sbr.rel target = $region3
    $region8: #{tpu_custom_call.1} parent=1 // loop_exit
      _
    %546 = vsyncpa [#allocation3], 1
    %s547 = scalar_lea.sflag [#allocation3], 1
    %548 = vsyncpa %s547, 1
    %549 = vsyncpa [#allocation4], 1
    %s550 = scalar_lea.sflag [#allocation4], 1
    %551 = vsyncpa %s550, 1

</llo_original>
